<compile_context>
chip_gen: v7x
topology: tpu7x:2x2x1
jax: 0.10.0
libtpu: 0.0.40
codegen_flags: <defaults>
</compile_context>

<pallas_src>
import jax
import jax.numpy as jnp
from jax.experimental import pallas as pl
from jax.experimental.pallas import tpu as pltpu


def neumf_kernel(
    gmf_u_ref, gmf_i_ref, mlp_ref,
    w1_ref, b1_ref, w2_ref, b2_ref, w3_ref, b3_ref,
    wo_gmf_ref, wo_mlp_ref, bo_ref,
    out_ref,
):
    f32 = jnp.float32
    bf16 = jnp.bfloat16

    # GMF branch: elementwise product (VPU, f32).
    phi_gmf = gmf_u_ref[...].astype(f32) * gmf_i_ref[...].astype(f32)     # [TB, D]

    # MLP branch: bf16 MXU operands, f32 accumulation, f32 ReLU / bias adds.
    h = jnp.dot(mlp_ref[...], w1_ref[...], preferred_element_type=f32) + b1_ref[...]
    h = jnp.maximum(h, 0.0)                                               # [TB, D]
    h = jnp.dot(h.astype(bf16), w2_ref[...], preferred_element_type=f32) + b2_ref[...]
    h = jnp.maximum(h, 0.0)                                               # [TB, D//2]
    phi_mlp = (jnp.dot(h.astype(bf16), w3_ref[...], preferred_element_type=f32)
               + b3_ref[...])                                             # [TB, D//4]

    # Output layer: cat([phi_gmf, phi_mlp]) @ Wo.T + bo with Wo pre-split.
    # N=1 matmuls replaced by VPU multiply + lane reduction.
    out_ref[...] = (
        jnp.sum(phi_gmf * wo_gmf_ref[...], axis=-1, keepdims=True)
        + jnp.sum(phi_mlp * wo_mlp_ref[...], axis=-1, keepdims=True)
        + bo_ref[...]
    )                                                                     # [TB, 1]


def prepare_params(params):
    """One-time prep: [in, out] weights, pre-split Wo, bf16 MXU operands."""
    D = params["GMF_user"].shape[1]
    bf16, f32 = jnp.bfloat16, jnp.float32
    wo = params["Wo"].astype(f32)                    # [1, D + D//4]
    return {
        "GMF_user": params["GMF_user"].astype(bf16),
        "GMF_item": params["GMF_item"].astype(bf16),
        "MLP_user": params["MLP_user"].astype(bf16),
        "MLP_item": params["MLP_item"].astype(bf16),
        "W1": params["W1"].T.astype(bf16),           # [2D, D]
        "b1": params["b1"].reshape(1, -1).astype(f32),
        "W2": params["W2"].T.astype(bf16),           # [D, D//2]
        "b2": params["b2"].reshape(1, -1).astype(f32),
        "W3": params["W3"].T.astype(bf16),           # [D//2, D//4]
        "b3": params["b3"].reshape(1, -1).astype(f32),
        "wo_gmf": wo[:, :D],                         # [1, D]    (f32, VPU path)
        "wo_mlp": wo[:, D:],                         # [1, D//4] (f32, VPU path)
        "bo": params["bo"].reshape(1, 1).astype(f32),
    }


def neumf_forward(user, item, p, *, tile_b=128):
    """user, item: int32 [B]; p: prepare_params(...) output. Returns f32 [B, 1]."""
    B = user.shape[0]
    D = p["GMF_user"].shape[1]
    n_tiles = pl.cdiv(B, tile_b)
    Bp = n_tiles * tile_b
    if Bp != B:
        user = jnp.pad(user, (0, Bp - B))
        item = jnp.pad(item, (0, Bp - B))

    # Embedding gathers stay in XLA (tables may exceed VMEM in production);
    # the gathered blocks stream into the kernel through the batch grid.
    gmf_u = jnp.take(p["GMF_user"], user, axis=0)                         # [Bp, D]
    gmf_i = jnp.take(p["GMF_item"], item, axis=0)                         # [Bp, D]
    mlp = jnp.concatenate(
        [jnp.take(p["MLP_user"], user, axis=0),
         jnp.take(p["MLP_item"], item, axis=0)], axis=1)                  # [Bp, 2D]

    def batch_spec(width):
        return pl.BlockSpec((tile_b, width), lambda b: (b, 0))

    def resident_spec(arr):      # whole (tiny) array, resident across the grid
        return pl.BlockSpec(arr.shape, lambda b: (0, 0))

    weights = (p["W1"], p["b1"], p["W2"], p["b2"], p["W3"], p["b3"],
               p["wo_gmf"], p["wo_mlp"], p["bo"])

    out = pl.pallas_call(
        neumf_kernel,
        out_shape=jax.ShapeDtypeStruct((Bp, 1), jnp.float32),
        grid_spec=pltpu.PrefetchScalarGridSpec(
            num_scalar_prefetch=0,
            grid=(n_tiles,),
            in_specs=[batch_spec(D), batch_spec(D), batch_spec(2 * D)]
                     + [resident_spec(w) for w in weights],
            out_specs=pl.BlockSpec((tile_b, 1), lambda b: (b, 0)),
        ),
        compiler_params=pltpu.CompilerParams(
            dimension_semantics=("parallel",)),
    )(gmf_u, gmf_i, mlp, *weights)
    return out[:B]


def init_params(key, n_users, n_items, emb_dim):
    ks = jax.random.split(key, 8)
    std = 0.01
    D = emb_dim
    return {
        "GMF_user": std * jax.random.normal(ks[0], (n_users, D), jnp.float32),
        "GMF_item": std * jax.random.normal(ks[1], (n_items, D), jnp.float32),
        "MLP_user": std * jax.random.normal(ks[2], (n_users, D), jnp.float32),
        "MLP_item": std * jax.random.normal(ks[3], (n_items, D), jnp.float32),
        # Linear weights stored PyTorch-style [out, in]; biases zero-filled.
        "W1": std * jax.random.normal(ks[4], (D, 2 * D), jnp.float32),
        "b1": jnp.zeros((D,), jnp.float32),
        "W2": std * jax.random.normal(ks[5], (D // 2, D), jnp.float32),
        "b2": jnp.zeros((D // 2,), jnp.float32),
        "W3": std * jax.random.normal(ks[6], (D // 4, D // 2), jnp.float32),
        "b3": jnp.zeros((D // 4,), jnp.float32),
        "Wo": std * jax.random.normal(ks[7], (1, D + D // 4), jnp.float32),
        "bo": jnp.zeros((1,), jnp.float32),
    }


def neumf_reference_f32(user, item, params):
    """Pure-JAX full-f32 reference matching the PyTorch forward exactly."""
    gmf_u = jnp.take(params["GMF_user"], user, axis=0)
    gmf_i = jnp.take(params["GMF_item"], item, axis=0)
    mlp_u = jnp.take(params["MLP_user"], user, axis=0)
    mlp_i = jnp.take(params["MLP_item"], item, axis=0)
    phi_gmf = gmf_u * gmf_i
    concat = jnp.concatenate([mlp_u, mlp_i], axis=1)
    h = jnp.maximum(concat @ params["W1"].T + params["b1"], 0.0)
    h = jnp.maximum(h @ params["W2"].T + params["b2"], 0.0)
    phi_mlp = h @ params["W3"].T + params["b3"]
    out = jnp.concatenate([phi_gmf, phi_mlp], axis=1)
    return out @ params["Wo"].T + params["bo"]


def neumf_reference_matched(user, item, p):
    """Pure-JAX reference using the same bf16/f32 mixed precision as the kernel."""
    f32, bf16 = jnp.float32, jnp.bfloat16
    gmf_u = jnp.take(p["GMF_user"], user, axis=0).astype(f32)
    gmf_i = jnp.take(p["GMF_item"], item, axis=0).astype(f32)
    mlp = jnp.concatenate([jnp.take(p["MLP_user"], user, axis=0),
                           jnp.take(p["MLP_item"], item, axis=0)], axis=1)
    phi_gmf = gmf_u * gmf_i
    h = jnp.maximum(jnp.dot(mlp, p["W1"], preferred_element_type=f32) + p["b1"], 0.0)
    h = jnp.maximum(jnp.dot(h.astype(bf16), p["W2"], preferred_element_type=f32) + p["b2"], 0.0)
    phi_mlp = jnp.dot(h.astype(bf16), p["W3"], preferred_element_type=f32) + p["b3"]
    return (jnp.sum(phi_gmf * p["wo_gmf"], axis=-1, keepdims=True)
            + jnp.sum(phi_mlp * p["wo_mlp"], axis=-1, keepdims=True)
            + p["bo"])


if __name__ == "__main__":
    n_users, n_items, emb_dim, batch = 64, 128, 32, 256

    key = jax.random.PRNGKey(0)
    kp, ku, ki = jax.random.split(key, 3)
    params = init_params(kp, n_users, n_items, emb_dim)
    prepped = prepare_params(params)
    user = jax.random.randint(ku, (batch,), 0, n_users, dtype=jnp.int32)
    item = jax.random.randint(ki, (batch,), 0, n_items, dtype=jnp.int32)

    fwd = jax.jit(neumf_forward)
    out = jax.block_until_ready(fwd(user, item, prepped))

    ref_matched = jax.block_until_ready(neumf_reference_matched(user, item, prepped))
    ref_f32 = jax.block_until_ready(neumf_reference_f32(user, item, params))

    assert out.shape == (batch, 1), out.shape
    # Exact-math check: same bf16/f32 mixed precision as the kernel.
    assert jnp.allclose(out, ref_matched, atol=1e-6, rtol=1e-4), (
        float(jnp.max(jnp.abs(out - ref_matched))))
    # Sanity vs. the full-f32 PyTorch-equivalent forward (bf16 quantization noise only).
    assert jnp.allclose(out, ref_f32, atol=3e-6, rtol=2e-2), (
        float(jnp.max(jnp.abs(out - ref_f32))))
    print("KERNEL_OK")
</pallas_src>

<mosaic_0001>
module attributes {stable_mosaic.version = 11 : i64} {
  func.func @neumf_kernel(%arg0: i32, %arg1: memref<128x32xbf16, #tpu.memory_space<vmem>>, %arg2: memref<128x32xbf16, #tpu.memory_space<vmem>>, %arg3: memref<128x64xbf16, #tpu.memory_space<vmem>>, %arg4: memref<64x32xbf16, #tpu.memory_space<vmem>>, %arg5: memref<1x32xf32, #tpu.memory_space<vmem>>, %arg6: memref<32x16xbf16, #tpu.memory_space<vmem>>, %arg7: memref<1x16xf32, #tpu.memory_space<vmem>>, %arg8: memref<16x8xbf16, #tpu.memory_space<vmem>>, %arg9: memref<1x8xf32, #tpu.memory_space<vmem>>, %arg10: memref<1x32xf32, #tpu.memory_space<vmem>>, %arg11: memref<1x8xf32, #tpu.memory_space<vmem>>, %arg12: memref<1x1xf32, #tpu.memory_space<vmem>>, %arg13: memref<128x1xf32, #tpu.memory_space<vmem>>) attributes {dimension_semantics = [#tpu.dimension_semantics<parallel>], iteration_bounds = array<i64: 2>, scalar_prefetch = 0 : i64, scratch_operands = 0 : i64, tpu.core_type = #tpu.core_type<tc>, window_params = [{transform_indices = @transform_0, window_bounds = array<i64: 128, 32>}, {transform_indices = @transform_1, window_bounds = array<i64: 128, 32>}, {transform_indices = @transform_2, window_bounds = array<i64: 128, 64>}, {pipeline_mode = #tpu.pipeline_mode<synchronous>, transform_indices = @transform_3, window_bounds = array<i64: 64, 32>}, {pipeline_mode = #tpu.pipeline_mode<synchronous>, transform_indices = @transform_4, window_bounds = array<i64: 1, 32>}, {pipeline_mode = #tpu.pipeline_mode<synchronous>, transform_indices = @transform_5, window_bounds = array<i64: 32, 16>}, {pipeline_mode = #tpu.pipeline_mode<synchronous>, transform_indices = @transform_6, window_bounds = array<i64: 1, 16>}, {pipeline_mode = #tpu.pipeline_mode<synchronous>, transform_indices = @transform_7, window_bounds = array<i64: 16, 8>}, {pipeline_mode = #tpu.pipeline_mode<synchronous>, transform_indices = @transform_8, window_bounds = array<i64: 1, 8>}, {pipeline_mode = #tpu.pipeline_mode<synchronous>, transform_indices = @transform_9, window_bounds = array<i64: 1, 32>}, {pipeline_mode = #tpu.pipeline_mode<synchronous>, transform_indices = @transform_10, window_bounds = array<i64: 1, 8>}, {pipeline_mode = #tpu.pipeline_mode<synchronous>, transform_indices = @transform_11, window_bounds = array<i64: 1, 1>}, {transform_indices = @transform_12, window_bounds = array<i64: 128, 1>}]} {
    %c0 = arith.constant 0 : index
    %c0_0 = arith.constant 0 : index
    %0 = vector.load %arg1[%c0, %c0_0] : memref<128x32xbf16, #tpu.memory_space<vmem>>, vector<128x32xbf16>
    %1 = arith.extf %0 : vector<128x32xbf16> to vector<128x32xf32>
    %c0_1 = arith.constant 0 : index
    %c0_2 = arith.constant 0 : index
    %2 = vector.load %arg2[%c0_1, %c0_2] : memref<128x32xbf16, #tpu.memory_space<vmem>>, vector<128x32xbf16>
    %3 = arith.extf %2 : vector<128x32xbf16> to vector<128x32xf32>
    %4 = arith.mulf %1, %3 : vector<128x32xf32>
    %c0_3 = arith.constant 0 : index
    %c0_4 = arith.constant 0 : index
    %5 = vector.load %arg3[%c0_3, %c0_4] : memref<128x64xbf16, #tpu.memory_space<vmem>>, vector<128x64xbf16>
    %c0_5 = arith.constant 0 : index
    %c0_6 = arith.constant 0 : index
    %6 = vector.load %arg4[%c0_5, %c0_6] : memref<64x32xbf16, #tpu.memory_space<vmem>>, vector<64x32xbf16>
    %cst = arith.constant dense<0.000000e+00> : vector<128x32xf32>
    %7 = tpu.matmul %5, %6, %cst {dimension_numbers = #tpu.dot_dimension_numbers<[1], [0], [0], [1], [0, 0, 1, 1], [], []>} : vector<128x64xbf16>, vector<64x32xbf16>, vector<128x32xf32> -> vector<128x32xf32>
    %c0_7 = arith.constant 0 : index
    %c0_8 = arith.constant 0 : index
    %8 = vector.load %arg5[%c0_7, %c0_8] : memref<1x32xf32, #tpu.memory_space<vmem>>, vector<1x32xf32>
    %9 = vector.broadcast %8 : vector<1x32xf32> to vector<128x32xf32>
    %10 = arith.addf %7, %9 : vector<128x32xf32>
    %cst_9 = arith.constant 0.000000e+00 : f32
    %11 = vector.broadcast %cst_9 : f32 to vector<128x32xf32>
    %12 = arith.maximumf %10, %11 : vector<128x32xf32>
    %13 = arith.truncf %12 : vector<128x32xf32> to vector<128x32xbf16>
    %c0_10 = arith.constant 0 : index
    %c0_11 = arith.constant 0 : index
    %14 = vector.load %arg6[%c0_10, %c0_11] : memref<32x16xbf16, #tpu.memory_space<vmem>>, vector<32x16xbf16>
    %cst_12 = arith.constant dense<0.000000e+00> : vector<128x16xf32>
    %15 = tpu.matmul %13, %14, %cst_12 {dimension_numbers = #tpu.dot_dimension_numbers<[1], [0], [0], [1], [0, 0, 1, 1], [], []>} : vector<128x32xbf16>, vector<32x16xbf16>, vector<128x16xf32> -> vector<128x16xf32>
    %c0_13 = arith.constant 0 : index
    %c0_14 = arith.constant 0 : index
    %16 = vector.load %arg7[%c0_13, %c0_14] : memref<1x16xf32, #tpu.memory_space<vmem>>, vector<1x16xf32>
    %17 = vector.broadcast %16 : vector<1x16xf32> to vector<128x16xf32>
    %18 = arith.addf %15, %17 : vector<128x16xf32>
    %cst_15 = arith.constant 0.000000e+00 : f32
    %19 = vector.broadcast %cst_15 : f32 to vector<128x16xf32>
    %20 = arith.maximumf %18, %19 : vector<128x16xf32>
    %21 = arith.truncf %20 : vector<128x16xf32> to vector<128x16xbf16>
    %c0_16 = arith.constant 0 : index
    %c0_17 = arith.constant 0 : index
    %22 = vector.load %arg8[%c0_16, %c0_17] : memref<16x8xbf16, #tpu.memory_space<vmem>>, vector<16x8xbf16>
    %cst_18 = arith.constant dense<0.000000e+00> : vector<128x8xf32>
    %23 = tpu.matmul %21, %22, %cst_18 {dimension_numbers = #tpu.dot_dimension_numbers<[1], [0], [0], [1], [0, 0, 1, 1], [], []>} : vector<128x16xbf16>, vector<16x8xbf16>, vector<128x8xf32> -> vector<128x8xf32>
    %c0_19 = arith.constant 0 : index
    %c0_20 = arith.constant 0 : index
    %24 = vector.load %arg9[%c0_19, %c0_20] : memref<1x8xf32, #tpu.memory_space<vmem>>, vector<1x8xf32>
    %25 = vector.broadcast %24 : vector<1x8xf32> to vector<128x8xf32>
    %26 = arith.addf %23, %25 : vector<128x8xf32>
    %c0_21 = arith.constant 0 : index
    %c0_22 = arith.constant 0 : index
    %27 = vector.load %arg10[%c0_21, %c0_22] : memref<1x32xf32, #tpu.memory_space<vmem>>, vector<1x32xf32>
    %28 = vector.broadcast %27 : vector<1x32xf32> to vector<128x32xf32>
    %29 = arith.mulf %4, %28 : vector<128x32xf32>
    %cst_23 = arith.constant dense<0.000000e+00> : vector<128xf32>
    %30 = vector.multi_reduction <add>, %29, %cst_23 [1] : vector<128x32xf32> to vector<128xf32>
    %31 = vector.shape_cast %30 : vector<128xf32> to vector<128x1xf32>
    %c0_24 = arith.constant 0 : index
    %c0_25 = arith.constant 0 : index
    %32 = vector.load %arg11[%c0_24, %c0_25] : memref<1x8xf32, #tpu.memory_space<vmem>>, vector<1x8xf32>
    %33 = vector.broadcast %32 : vector<1x8xf32> to vector<128x8xf32>
    %34 = arith.mulf %26, %33 : vector<128x8xf32>
    %cst_26 = arith.constant dense<0.000000e+00> : vector<128xf32>
    %35 = vector.multi_reduction <add>, %34, %cst_26 [1] : vector<128x8xf32> to vector<128xf32>
    %36 = vector.shape_cast %35 : vector<128xf32> to vector<128x1xf32>
    %37 = arith.addf %31, %36 : vector<128x1xf32>
    %c0_27 = arith.constant 0 : index
    %c0_28 = arith.constant 0 : index
    %38 = vector.load %arg12[%c0_27, %c0_28] : memref<1x1xf32, #tpu.memory_space<vmem>>, vector<1x1xf32>
    %39 = vector.broadcast %38 : vector<1x1xf32> to vector<128x1xf32>
    %40 = arith.addf %37, %39 : vector<128x1xf32>
    %c0_29 = arith.constant 0 : index
    %c0_30 = arith.constant 0 : index
    %41 = vector.load %arg13[%c0_29, %c0_30] : memref<128x1xf32, #tpu.memory_space<vmem>>, vector<128x1xf32>
    tpu.vector_store %arg13[%c0_29, %c0_30], %40 {strides = array<i32>} : memref<128x1xf32, #tpu.memory_space<vmem>>, vector<128x1xf32>,
    return
  }
  func.func @transform_0(%arg0: i32) -> (i32, i32) {
    %c0_i32 = arith.constant 0 : i32
    %c0_i32_0 = arith.constant 0 : i32
    return %arg0, %c0_i32 : i32, i32
  }
  func.func @transform_1(%arg0: i32) -> (i32, i32) {
    %c0_i32 = arith.constant 0 : i32
    %c0_i32_0 = arith.constant 0 : i32
    return %arg0, %c0_i32 : i32, i32
  }
  func.func @transform_2(%arg0: i32) -> (i32, i32) {
    %c0_i32 = arith.constant 0 : i32
    %c0_i32_0 = arith.constant 0 : i32
    return %arg0, %c0_i32 : i32, i32
  }
  func.func @transform_3(%arg0: i32) -> (i32, i32) {
    %c0_i32 = arith.constant 0 : i32
    %c0_i32_0 = arith.constant 0 : i32
    %c0_i32_1 = arith.constant 0 : i32
    return %c0_i32, %c0_i32_0 : i32, i32
  }
  func.func @transform_4(%arg0: i32) -> (i32, i32) {
    %c0_i32 = arith.constant 0 : i32
    %c0_i32_0 = arith.constant 0 : i32
    %c0_i32_1 = arith.constant 0 : i32
    return %c0_i32, %c0_i32_0 : i32, i32
  }
  func.func @transform_5(%arg0: i32) -> (i32, i32) {
    %c0_i32 = arith.constant 0 : i32
    %c0_i32_0 = arith.constant 0 : i32
    %c0_i32_1 = arith.constant 0 : i32
    return %c0_i32, %c0_i32_0 : i32, i32
  }
  func.func @transform_6(%arg0: i32) -> (i32, i32) {
    %c0_i32 = arith.constant 0 : i32
    %c0_i32_0 = arith.constant 0 : i32
    %c0_i32_1 = arith.constant 0 : i32
    return %c0_i32, %c0_i32_0 : i32, i32
  }
  func.func @transform_7(%arg0: i32) -> (i32, i32) {
    %c0_i32 = arith.constant 0 : i32
    %c0_i32_0 = arith.constant 0 : i32
    %c0_i32_1 = arith.constant 0 : i32
    return %c0_i32, %c0_i32_0 : i32, i32
  }
  func.func @transform_8(%arg0: i32) -> (i32, i32) {
    %c0_i32 = arith.constant 0 : i32
    %c0_i32_0 = arith.constant 0 : i32
    %c0_i32_1 = arith.constant 0 : i32
    return %c0_i32, %c0_i32_0 : i32, i32
  }
  func.func @transform_9(%arg0: i32) -> (i32, i32) {
    %c0_i32 = arith.constant 0 : i32
    %c0_i32_0 = arith.constant 0 : i32
    %c0_i32_1 = arith.constant 0 : i32
    return %c0_i32, %c0_i32_0 : i32, i32
  }
  func.func @transform_10(%arg0: i32) -> (i32, i32) {
    %c0_i32 = arith.constant 0 : i32
    %c0_i32_0 = arith.constant 0 : i32
    %c0_i32_1 = arith.constant 0 : i32
    return %c0_i32, %c0_i32_0 : i32, i32
  }
  func.func @transform_11(%arg0: i32) -> (i32, i32) {
    %c0_i32 = arith.constant 0 : i32
    %c0_i32_0 = arith.constant 0 : i32
    %c0_i32_1 = arith.constant 0 : i32
    return %c0_i32, %c0_i32_0 : i32, i32
  }
  func.func @transform_12(%arg0: i32) -> (i32, i32) {
    %c0_i32 = arith.constant 0 : i32
    %c0_i32_0 = arith.constant 0 : i32
    return %arg0, %c0_i32 : i32, i32
  }
}

</mosaic_0001>

<llo_original>
// kernel: neumf_forward.1
$region0: #{neumf_forward.1}
  #allocation0 [shape = 'u32[]', space=smem, size = 0x4, offset = 0x4, fixed_abs, tag = 'smem constant byte address 0x4 - core index']
  #allocation1 [shape = 'u32[144,128]{1,0:T(1,128)}', space=vmem, size = 0x12000, scoped, tag = 'internal scratch']
  #allocation2 [shape = 'f32[1,1]{1,0:T(1,128)S(1)}', space=vmem, size = 0x200, scoped, tag = 'scoped memory for neumf_forward.1']
  %s0 = inlined_call_operand.vmem [shape: bf16[256,32], index: 0, kind: input, shape index: {}]
  %s1 = inlined_call_operand.vmem [shape: bf16[256,32], index: 1, kind: input, shape index: {}]
  %s2 = inlined_call_operand.vmem [shape: bf16[256,64], index: 2, kind: input, shape index: {}]
  %s3 = inlined_call_operand.vmem [shape: bf16[64,32], index: 3, kind: input, shape index: {}]
  %s4 = inlined_call_operand.vmem [shape: f32[1,32], index: 4, kind: input, shape index: {}]
  %s5 = inlined_call_operand.vmem [shape: bf16[32,16], index: 5, kind: input, shape index: {}]
  %s6 = inlined_call_operand.vmem [shape: f32[1,16], index: 6, kind: input, shape index: {}]
  %s7 = inlined_call_operand.vmem [shape: bf16[16,8], index: 7, kind: input, shape index: {}]
  %s8 = inlined_call_operand.vmem [shape: f32[1,8], index: 8, kind: input, shape index: {}]
  %s9 = inlined_call_operand.vmem [shape: f32[1,32], index: 9, kind: input, shape index: {}]
  %s10 = inlined_call_operand.vmem [shape: f32[1,8], index: 10, kind: input, shape index: {}]
  %s11 = inlined_call_operand.<no memory space> [shape: f32[1,1], index: 11, kind: input, shape index: {}]
  %s12 = inlined_call_operand.vmem [shape: f32[256,1], index: 12, kind: output, shape index: {}]
  %s13 = sld [smem:[#allocation0]]
  $region81: #{neumf_forward.1} parent=0
    _
  %s15 = ssub.s32 1, %s13
  %s16 = scalar_select 0, %s15, %s13
  %v17 = vstv %s11
  %18 = vst [vmem:[#allocation2] sm:$0x1] %v17
  loop: start=0, step=1, limit=4
  $region2: #{neumf_forward.1} parent=0 // loop_pre_header
    _
  $region3: #{neumf_forward.1} parent=0 // loop_header
    %s20 = sphi 0, %s24
    %p21 = scmp.ge.s32.totalorder %s20, 4
    %s30 = sphi 0, %s32
    %s33 = sphi 0, %s30
    %s34 = sphi 0, %s33
    %s50 = sphi 0, %s34
    %s56 = sphi 0, %s58
    %s59 = sphi 0, %s56
    %s60 = sphi 0, %s59
    %s76 = sphi 0, %s60
    %s82 = sphi 0, %s84
    %s85 = sphi 0, %s82
    %s86 = sphi 0, %s85
    %s102 = sphi 0, %s86
    %s106 = sphi 0, %s106
    %s108 = sphi 0, %s106
    %s109 = sphi 0, %s108
    %s123 = sphi 0, %s109
    %s127 = sphi 0, %s127
    %s129 = sphi 0, %s127
    %s130 = sphi 0, %s129
    %s144 = sphi 0, %s130
    %s148 = sphi 0, %s148
    %s150 = sphi 0, %s148
    %s151 = sphi 0, %s150
    %s165 = sphi 0, %s151
    %s169 = sphi 0, %s169
    %s171 = sphi 0, %s169
    %s172 = sphi 0, %s171
    %s186 = sphi 0, %s172
    %s190 = sphi 0, %s190
    %s192 = sphi 0, %s190
    %s193 = sphi 0, %s192
    %s207 = sphi 0, %s193
    %s211 = sphi 0, %s211
    %s213 = sphi 0, %s211
    %s214 = sphi 0, %s213
    %s228 = sphi 0, %s214
    %s232 = sphi 0, %s232
    %s234 = sphi 0, %s232
    %s235 = sphi 0, %s234
    %s249 = sphi 0, %s235
    %s253 = sphi 0, %s253
    %s255 = sphi 0, %s253
    %s256 = sphi 0, %s255
    %s270 = sphi 0, %s256
    %s274 = sphi 0, %s274
    %s276 = sphi 0, %s274
    %s277 = sphi 0, %s276
    %s291 = sphi 0, %s277
    %s297 = sphi 0, %s299
    %s300 = sphi 0, %s297
    %s301 = sphi 0, %s300
    %s317 = sphi 0, %s301
  $region4: #{neumf_forward.1} parent=0 // loop_header_branch
    %23 = sbr.rel (%p21) target = $region8
  $region5: #{neumf_forward.1} parent=0 // loop_body
    %s25 = ssub.s32 %s20, 1
    %s26 = ssub.s32 %s20, 2
    %s27 = sadd.s32 %s20, 1
    %s28 = ssub.s32 %s20, %s27
    %p29 = scmp.eq.s32.totalorder %s28, 0
    %s31 = sadd.s32 %s30, 1
    %s32 = scalar_select %p29, %s30, %s31
    %p35 = pneg %p29
    %p36 = scmp.eq.s32.totalorder %s20, 1
    %p37 = por %p35, %p36
    %p38 = scmp.ne.s32.totalorder %s30, %s33
    %p39 = scmp.eq.s32.totalorder %s20, 0
    %p40 = por %p38, %p39
    %p41 = scmp.ne.s32.totalorder %s30, %s33
    %p42 = scmp.eq.s32.totalorder %s25, 1
    %p43 = por %p41, %p42
    %p44 = scmp.ne.s32.totalorder %s33, %s34
    %p45 = scmp.eq.s32.totalorder %s25, 0
    %p46 = por %p44, %p45
    %p47 = scmp.ne.s32.totalorder %s33, %s34
    %p48 = scmp.eq.s32.totalorder %s26, 1
    %p49 = por %p47, %p48
    %p51 = scmp.ne.s32.totalorder %s34, %s50
    %p52 = scmp.eq.s32.totalorder %s26, 0
    %p53 = por %p51, %p52
    %s54 = ssub.s32 %s20, %s27
    %p55 = scmp.eq.s32.totalorder %s54, 0
    %s57 = sadd.s32 %s56, 1
    %s58 = scalar_select %p55, %s56, %s57
    %p61 = pneg %p55
    %p62 = scmp.eq.s32.totalorder %s20, 1
    %p63 = por %p61, %p62
    %p64 = scmp.ne.s32.totalorder %s56, %s59
    %p65 = scmp.eq.s32.totalorder %s20, 0
    %p66 = por %p64, %p65
    %p67 = scmp.ne.s32.totalorder %s56, %s59
    %p68 = scmp.eq.s32.totalorder %s25, 1
    %p69 = por %p67, %p68
    %p70 = scmp.ne.s32.totalorder %s59, %s60
    %p71 = scmp.eq.s32.totalorder %s25, 0
    %p72 = por %p70, %p71
    %p73 = scmp.ne.s32.totalorder %s59, %s60
    %p74 = scmp.eq.s32.totalorder %s26, 1
    %p75 = por %p73, %p74
    %p77 = scmp.ne.s32.totalorder %s60, %s76
    %p78 = scmp.eq.s32.totalorder %s26, 0
    %p79 = por %p77, %p78
    %s80 = ssub.s32 %s20, %s27
    %p81 = scmp.eq.s32.totalorder %s80, 0
    %s83 = sadd.s32 %s82, 1
    %s84 = scalar_select %p81, %s82, %s83
    %p87 = pneg %p81
    %p88 = scmp.eq.s32.totalorder %s20, 1
    %p89 = por %p87, %p88
    %p90 = scmp.ne.s32.totalorder %s82, %s85
    %p91 = scmp.eq.s32.totalorder %s20, 0
    %p92 = por %p90, %p91
    %p93 = scmp.ne.s32.totalorder %s82, %s85
    %p94 = scmp.eq.s32.totalorder %s25, 1
    %p95 = por %p93, %p94
    %p96 = scmp.ne.s32.totalorder %s85, %s86
    %p97 = scmp.eq.s32.totalorder %s25, 0
    %p98 = por %p96, %p97
    %p99 = scmp.ne.s32.totalorder %s85, %s86
    %p100 = scmp.eq.s32.totalorder %s26, 1
    %p101 = por %p99, %p100
    %p103 = scmp.ne.s32.totalorder %s86, %s102
    %p104 = scmp.eq.s32.totalorder %s26, 0
    %p105 = por %p103, %p104
    %s107 = sadd.s32 %s106, 1
    %p110 = scmp.eq.s32.totalorder %s20, 1
    %p111 = scmp.ne.s32.totalorder %s106, %s108
    %p112 = scmp.eq.s32.totalorder %s20, 0
    %p113 = por %p111, %p112
    %p114 = scmp.ne.s32.totalorder %s106, %s108
    %p115 = scmp.eq.s32.totalorder %s25, 1
    %p116 = por %p114, %p115
    %p117 = scmp.ne.s32.totalorder %s108, %s109
    %p118 = scmp.eq.s32.totalorder %s25, 0
    %p119 = por %p117, %p118
    %p120 = scmp.ne.s32.totalorder %s108, %s109
    %p121 = scmp.eq.s32.totalorder %s26, 1
    %p122 = por %p120, %p121
    %p124 = scmp.ne.s32.totalorder %s109, %s123
    %p125 = scmp.eq.s32.totalorder %s26, 0
    %p126 = por %p124, %p125
    %s128 = sadd.s32 %s127, 1
    %p131 = scmp.eq.s32.totalorder %s20, 1
    %p132 = scmp.ne.s32.totalorder %s127, %s129
    %p133 = scmp.eq.s32.totalorder %s20, 0
    %p134 = por %p132, %p133
    %p135 = scmp.ne.s32.totalorder %s127, %s129
    %p136 = scmp.eq.s32.totalorder %s25, 1
    %p137 = por %p135, %p136
    %p138 = scmp.ne.s32.totalorder %s129, %s130
    %p139 = scmp.eq.s32.totalorder %s25, 0
    %p140 = por %p138, %p139
    %p141 = scmp.ne.s32.totalorder %s129, %s130
    %p142 = scmp.eq.s32.totalorder %s26, 1
    %p143 = por %p141, %p142
    %p145 = scmp.ne.s32.totalorder %s130, %s144
    %p146 = scmp.eq.s32.totalorder %s26, 0
    %p147 = por %p145, %p146
    %s149 = sadd.s32 %s148, 1
    %p152 = scmp.eq.s32.totalorder %s20, 1
    %p153 = scmp.ne.s32.totalorder %s148, %s150
    %p154 = scmp.eq.s32.totalorder %s20, 0
    %p155 = por %p153, %p154
    %p156 = scmp.ne.s32.totalorder %s148, %s150
    %p157 = scmp.eq.s32.totalorder %s25, 1
    %p158 = por %p156, %p157
    %p159 = scmp.ne.s32.totalorder %s150, %s151
    %p160 = scmp.eq.s32.totalorder %s25, 0
    %p161 = por %p159, %p160
    %p162 = scmp.ne.s32.totalorder %s150, %s151
    %p163 = scmp.eq.s32.totalorder %s26, 1
    %p164 = por %p162, %p163
    %p166 = scmp.ne.s32.totalorder %s151, %s165
    %p167 = scmp.eq.s32.totalorder %s26, 0
    %p168 = por %p166, %p167
    %s170 = sadd.s32 %s169, 1
    %p173 = scmp.eq.s32.totalorder %s20, 1
    %p174 = scmp.ne.s32.totalorder %s169, %s171
    %p175 = scmp.eq.s32.totalorder %s20, 0
    %p176 = por %p174, %p175
    %p177 = scmp.ne.s32.totalorder %s169, %s171
    %p178 = scmp.eq.s32.totalorder %s25, 1
    %p179 = por %p177, %p178
    %p180 = scmp.ne.s32.totalorder %s171, %s172
    %p181 = scmp.eq.s32.totalorder %s25, 0
    %p182 = por %p180, %p181
    %p183 = scmp.ne.s32.totalorder %s171, %s172
    %p184 = scmp.eq.s32.totalorder %s26, 1
    %p185 = por %p183, %p184
    %p187 = scmp.ne.s32.totalorder %s172, %s186
    %p188 = scmp.eq.s32.totalorder %s26, 0
    %p189 = por %p187, %p188
    %s191 = sadd.s32 %s190, 1
    %p194 = scmp.eq.s32.totalorder %s20, 1
    %p195 = scmp.ne.s32.totalorder %s190, %s192
    %p196 = scmp.eq.s32.totalorder %s20, 0
    %p197 = por %p195, %p196
    %p198 = scmp.ne.s32.totalorder %s190, %s192
    %p199 = scmp.eq.s32.totalorder %s25, 1
    %p200 = por %p198, %p199
    %p201 = scmp.ne.s32.totalorder %s192, %s193
    %p202 = scmp.eq.s32.totalorder %s25, 0
    %p203 = por %p201, %p202
    %p204 = scmp.ne.s32.totalorder %s192, %s193
    %p205 = scmp.eq.s32.totalorder %s26, 1
    %p206 = por %p204, %p205
    %p208 = scmp.ne.s32.totalorder %s193, %s207
    %p209 = scmp.eq.s32.totalorder %s26, 0
    %p210 = por %p208, %p209
    %s212 = sadd.s32 %s211, 1
    %p215 = scmp.eq.s32.totalorder %s20, 1
    %p216 = scmp.ne.s32.totalorder %s211, %s213
    %p217 = scmp.eq.s32.totalorder %s20, 0
    %p218 = por %p216, %p217
    %p219 = scmp.ne.s32.totalorder %s211, %s213
    %p220 = scmp.eq.s32.totalorder %s25, 1
    %p221 = por %p219, %p220
    %p222 = scmp.ne.s32.totalorder %s213, %s214
    %p223 = scmp.eq.s32.totalorder %s25, 0
    %p224 = por %p222, %p223
    %p225 = scmp.ne.s32.totalorder %s213, %s214
    %p226 = scmp.eq.s32.totalorder %s26, 1
    %p227 = por %p225, %p226
    %p229 = scmp.ne.s32.totalorder %s214, %s228
    %p230 = scmp.eq.s32.totalorder %s26, 0
    %p231 = por %p229, %p230
    %s233 = sadd.s32 %s232, 1
    %p236 = scmp.eq.s32.totalorder %s20, 1
    %p237 = scmp.ne.s32.totalorder %s232, %s234
    %p238 = scmp.eq.s32.totalorder %s20, 0
    %p239 = por %p237, %p238
    %p240 = scmp.ne.s32.totalorder %s232, %s234
    %p241 = scmp.eq.s32.totalorder %s25, 1
    %p242 = por %p240, %p241
    %p243 = scmp.ne.s32.totalorder %s234, %s235
    %p244 = scmp.eq.s32.totalorder %s25, 0
    %p245 = por %p243, %p244
    %p246 = scmp.ne.s32.totalorder %s234, %s235
    %p247 = scmp.eq.s32.totalorder %s26, 1
    %p248 = por %p246, %p247
    %p250 = scmp.ne.s32.totalorder %s235, %s249
    %p251 = scmp.eq.s32.totalorder %s26, 0
    %p252 = por %p250, %p251
    %s254 = sadd.s32 %s253, 1
    %p257 = scmp.eq.s32.totalorder %s20, 1
    %p258 = scmp.ne.s32.totalorder %s253, %s255
    %p259 = scmp.eq.s32.totalorder %s20, 0
    %p260 = por %p258, %p259
    %p261 = scmp.ne.s32.totalorder %s253, %s255
    %p262 = scmp.eq.s32.totalorder %s25, 1
    %p263 = por %p261, %p262
    %p264 = scmp.ne.s32.totalorder %s255, %s256
    %p265 = scmp.eq.s32.totalorder %s25, 0
    %p266 = por %p264, %p265
    %p267 = scmp.ne.s32.totalorder %s255, %s256
    %p268 = scmp.eq.s32.totalorder %s26, 1
    %p269 = por %p267, %p268
    %p271 = scmp.ne.s32.totalorder %s256, %s270
    %p272 = scmp.eq.s32.totalorder %s26, 0
    %p273 = por %p271, %p272
    %s275 = sadd.s32 %s274, 1
    %p278 = scmp.eq.s32.totalorder %s20, 1
    %p279 = scmp.ne.s32.totalorder %s274, %s276
    %p280 = scmp.eq.s32.totalorder %s20, 0
    %p281 = por %p279, %p280
    %p282 = scmp.ne.s32.totalorder %s274, %s276
    %p283 = scmp.eq.s32.totalorder %s25, 1
    %p284 = por %p282, %p283
    %p285 = scmp.ne.s32.totalorder %s276, %s277
    %p286 = scmp.eq.s32.totalorder %s25, 0
    %p287 = por %p285, %p286
    %p288 = scmp.ne.s32.totalorder %s276, %s277
    %p289 = scmp.eq.s32.totalorder %s26, 1
    %p290 = por %p288, %p289
    %p292 = scmp.ne.s32.totalorder %s277, %s291
    %p293 = scmp.eq.s32.totalorder %s26, 0
    %p294 = por %p292, %p293
    %s295 = ssub.s32 %s20, %s27
    %p296 = scmp.eq.s32.totalorder %s295, 0
    %s298 = sadd.s32 %s297, 1
    %s299 = scalar_select %p296, %s297, %s298
    %p302 = pneg %p296
    %p303 = scmp.eq.s32.totalorder %s20, 1
    %p304 = por %p302, %p303
    %p305 = scmp.ne.s32.totalorder %s297, %s300
    %p306 = scmp.eq.s32.totalorder %s20, 0
    %p307 = por %p305, %p306
    %p308 = scmp.ne.s32.totalorder %s297, %s300
    %p309 = scmp.eq.s32.totalorder %s25, 1
    %p310 = por %p308, %p309
    %p311 = scmp.ne.s32.totalorder %s300, %s301
    %p312 = scmp.eq.s32.totalorder %s25, 0
    %p313 = por %p311, %p312
    %p314 = scmp.ne.s32.totalorder %s300, %s301
    %p315 = scmp.eq.s32.totalorder %s26, 1
    %p316 = por %p314, %p315
    %p318 = scmp.ne.s32.totalorder %s301, %s317
    %p319 = scmp.eq.s32.totalorder %s26, 0
    %p320 = por %p318, %p319
    %p321 = scmp.le.s32.totalorder 1, %s20
    %p322 = scmp.lt.s32.totalorder %s20, 3
    %p323 = pnand %p321, %p322
    %p324 = pneg %p323
    // Predicated region
    $region9: #{neumf_forward.1} parent=5 // pred_check
      _
    $region10: #{neumf_forward.1} parent=5 // pred_check_branch
      %326 = sbr.rel (%p323) target = $region12
    $region11: #{neumf_forward.1} parent=5 // pred_region
      %s327 = ssub.s32 %s20, 1
      // Predicated region
      $region13: #{neumf_forward.1} parent=11 // pred_check
        %p328 = pneg %p119
      $region14: #{neumf_forward.1} parent=11 // pred_check_branch
        %330 = sbr.rel (%p328) target = $region16
      $region15: #{neumf_forward.1} parent=11 // pred_region
        _
      $region16: #{neumf_forward.1} parent=11 // pred_fallthru
        _
      // Predicated region
      $region17: #{neumf_forward.1} parent=11 // pred_check
        %p331 = pneg %p140
      $region18: #{neumf_forward.1} parent=11 // pred_check_branch
        %333 = sbr.rel (%p331) target = $region20
      $region19: #{neumf_forward.1} parent=11 // pred_region
        _
      $region20: #{neumf_forward.1} parent=11 // pred_fallthru
        _
      // Predicated region
      $region21: #{neumf_forward.1} parent=11 // pred_check
        %p334 = pneg %p161
      $region22: #{neumf_forward.1} parent=11 // pred_check_branch
        %336 = sbr.rel (%p334) target = $region24
      $region23: #{neumf_forward.1} parent=11 // pred_region
        _
      $region24: #{neumf_forward.1} parent=11 // pred_fallthru
        _
      // Predicated region
      $region25: #{neumf_forward.1} parent=11 // pred_check
        %p337 = pneg %p182
      $region26: #{neumf_forward.1} parent=11 // pred_check_branch
        %339 = sbr.rel (%p337) target = $region28
      $region27: #{neumf_forward.1} parent=11 // pred_region
        _
      $region28: #{neumf_forward.1} parent=11 // pred_fallthru
        _
      // Predicated region
      $region29: #{neumf_forward.1} parent=11 // pred_check
        %p340 = pneg %p203
      $region30: #{neumf_forward.1} parent=11 // pred_check_branch
        %342 = sbr.rel (%p340) target = $region32
      $region31: #{neumf_forward.1} parent=11 // pred_region
        _
      $region32: #{neumf_forward.1} parent=11 // pred_fallthru
        _
      // Predicated region
      $region33: #{neumf_forward.1} parent=11 // pred_check
        %p343 = pneg %p224
      $region34: #{neumf_forward.1} parent=11 // pred_check_branch
        %345 = sbr.rel (%p343) target = $region36
      $region35: #{neumf_forward.1} parent=11 // pred_region
        _
      $region36: #{neumf_forward.1} parent=11 // pred_fallthru
        _
      // Predicated region
      $region37: #{neumf_forward.1} parent=11 // pred_check
        %p346 = pneg %p245
      $region38: #{neumf_forward.1} parent=11 // pred_check_branch
        %348 = sbr.rel (%p346) target = $region40
      $region39: #{neumf_forward.1} parent=11 // pred_region
        _
      $region40: #{neumf_forward.1} parent=11 // pred_fallthru
        _
      // Predicated region
      $region41: #{neumf_forward.1} parent=11 // pred_check
        %p349 = pneg %p266
      $region42: #{neumf_forward.1} parent=11 // pred_check_branch
        %351 = sbr.rel (%p349) target = $region44
      $region43: #{neumf_forward.1} parent=11 // pred_region
        _
      $region44: #{neumf_forward.1} parent=11 // pred_fallthru
        _
      // Predicated region
      $region45: #{neumf_forward.1} parent=11 // pred_check
        %p352 = pneg %p287
      $region46: #{neumf_forward.1} parent=11 // pred_check_branch
        %354 = sbr.rel (%p352) target = $region48
      $region47: #{neumf_forward.1} parent=11 // pred_region
        _
      $region48: #{neumf_forward.1} parent=11 // pred_fallthru
        _
    $region12: #{neumf_forward.1} parent=5 // pred_fallthru
      _
    %p355 = scmp.lt.s32.totalorder %s20, 2
    // Predicated region
    $region49: #{neumf_forward.1} parent=5 // pred_check
      %p356 = pneg %p355
    $region50: #{neumf_forward.1} parent=5 // pred_check_branch
      %358 = sbr.rel (%p356) target = $region52
    $region51: #{neumf_forward.1} parent=5 // pred_region
      // Predicated region
      $region53: #{neumf_forward.1} parent=51 // pred_check
        %p359 = pneg %p40
      $region54: #{neumf_forward.1} parent=51 // pred_check_branch
        %361 = sbr.rel (%p359) target = $region56
      $region55: #{neumf_forward.1} parent=51 // pred_region
        %s362 = smul.u32 16, %s20
        %p363 = scmp.lt.s32.totalorder %s362, 31
        %s364 = scalar_select %p363, %s362, 31
        %s365 = smul.addr %s364, 4
        %s366 = scalar_lea.vmem %s0, %s365
        %s367 = smul.u32 16, %s20
      $region56: #{neumf_forward.1} parent=51 // pred_fallthru
        _
      // Predicated region
      $region57: #{neumf_forward.1} parent=51 // pred_check
        %p368 = pneg %p66
      $region58: #{neumf_forward.1} parent=51 // pred_check_branch
        %370 = sbr.rel (%p368) target = $region60
      $region59: #{neumf_forward.1} parent=51 // pred_region
        %s371 = smul.u32 16, %s20
        %p372 = scmp.lt.s32.totalorder %s371, 31
        %s373 = scalar_select %p372, %s371, 31
        %s374 = smul.addr %s373, 4
        %s375 = scalar_lea.vmem %s1, %s374
        %s376 = smul.u32 16, %s20
      $region60: #{neumf_forward.1} parent=51 // pred_fallthru
        _
      // Predicated region
      $region61: #{neumf_forward.1} parent=51 // pred_check
        %p377 = pneg %p92
      $region62: #{neumf_forward.1} parent=51 // pred_check_branch
        %379 = sbr.rel (%p377) target = $region64
      $region63: #{neumf_forward.1} parent=51 // pred_region
        %s380 = smul.u32 16, %s20
        %p381 = scmp.lt.s32.totalorder %s380, 31
        %s382 = scalar_select %p381, %s380, 31
        %s383 = smul.addr %s382, 4
        %s384 = scalar_lea.vmem %s2, %s383
        %s385 = smul.u32 16, %s20
      $region64: #{neumf_forward.1} parent=51 // pred_fallthru
        _
    $region52: #{neumf_forward.1} parent=5 // pred_fallthru
      _
    %p386 = scmp.le.s32.totalorder 1, %s20
    %p387 = scmp.lt.s32.totalorder %s20, 3
    %p388 = pnand %p386, %p387
    %p389 = pneg %p388
    // Predicated region
    $region65: #{neumf_forward.1} parent=5 // pred_check
      _
    $region66: #{neumf_forward.1} parent=5 // pred_check_branch
      %391 = sbr.rel (%p388) target = $region68
    $region67: #{neumf_forward.1} parent=5 // pred_region
      %s392 = ssub.s32 %s20, 1
      %s393 = smul.u32 16, %s25
      %p394 = scmp.lt.s32.totalorder %s393, 31
      %s395 = scalar_select %p394, %s393, 31
      %s396 = smul.addr %s395, 4
      %s397 = scalar_lea.vmem %s0, %s396
      %p398 = pneg %p46
      %p399 = pneg %p43
      %s400 = smul.u32 16, %s25
      %p401 = scmp.lt.s32.totalorder %s400, 31
      %s402 = scalar_select %p401, %s400, 31
      %s403 = smul.addr %s402, 4
      %s404 = scalar_lea.vmem %s1, %s403
      %p405 = pneg %p72
      %p406 = pneg %p69
      %s407 = smul.u32 16, %s25
      %p408 = scmp.lt.s32.totalorder %s407, 31
      %s409 = scalar_select %p408, %s407, 31
      %s410 = smul.addr %s409, 4
      %s411 = scalar_lea.vmem %s2, %s410
      %p412 = pneg %p98
      %p413 = pneg %p95
      %p414 = pneg %p119
      %p415 = pneg %p116
      %p416 = pneg %p140
      %p417 = pneg %p137
      %p418 = pneg %p161
      %p419 = pneg %p158
      %p420 = pneg %p182
      %p421 = pneg %p179
      %p422 = pneg %p203
      %p423 = pneg %p200
      %p424 = pneg %p224
      %p425 = pneg %p221
      %p426 = pneg %p245
      %p427 = pneg %p242
      %p428 = pneg %p266
      %p429 = pneg %p263
      %p430 = pneg %p287
      %p431 = pneg %p284
      %p432 = pneg %p313
      %p433 = pneg %p310
      %s434 = smul.u32 16, %s25
      %p435 = scmp.lt.s32.totalorder %s434, 31
      %s436 = scalar_select %p435, %s434, 31
      %s437 = smul.addr %s436, 8
      %s438 = scalar_lea.vmem %s12, %s437
      %s439 = smul.u32 16, %s25
      %p440 = scmp.lt.s32.totalorder %s439, 31
      %s441 = scalar_select %p440, %s439, 31
      %s442 = smul.addr %s441, 4
      %s443 = scalar_lea.vmem %s0, %s442
      %s444 = smul.u32 16, %s25
      %s445 = smul.u32 16, %s25
      %p446 = scmp.lt.s32.totalorder %s445, 31
      %s447 = scalar_select %p446, %s445, 31
      %s448 = smul.addr %s447, 4
      %s449 = scalar_lea.vmem %s1, %s448
      %s450 = smul.u32 16, %s25
      %s451 = smul.u32 16, %s25
      %p452 = scmp.lt.s32.totalorder %s451, 31
      %s453 = scalar_select %p452, %s451, 31
      %s454 = smul.addr %s453, 4
      %s455 = scalar_lea.vmem %s2, %s454
      %s456 = smul.u32 16, %s25
      %s457 = smul.u32 16, %s25
      %p458 = scmp.lt.s32.totalorder %s457, 31
      %s459 = scalar_select %p458, %s457, 31
      %s460 = smul.addr %s459, 8
      %s461 = scalar_lea.vmem %s12, %s460
      %s462 = smul.u32 16, %s25
      %v464 = vld [vmem:[%s443] sm:$0xf]
      %v465 = vld [vmem:[%s443 + $0x4] sm:$0xf]
      %v466 = vld [vmem:[%s443 + $0x8] sm:$0xf]
      %v467 = vld [vmem:[%s443 + $0xc] sm:$0xf]
      %v468 = vld [vmem:[%s443 + $0x10] sm:$0xf]
      %v469 = vld [vmem:[%s443 + $0x14] sm:$0xf]
      %v470 = vld [vmem:[%s443 + $0x18] sm:$0xf]
      %v471 = vld [vmem:[%s443 + $0x1c] sm:$0xf]
      %v472 = vld [vmem:[%s443 + $0x20] sm:$0xf]
      %v473 = vld [vmem:[%s443 + $0x24] sm:$0xf]
      %v474 = vld [vmem:[%s443 + $0x28] sm:$0xf]
      %v475 = vld [vmem:[%s443 + $0x2c] sm:$0xf]
      %v476 = vld [vmem:[%s443 + $0x30] sm:$0xf]
      %v477 = vld [vmem:[%s443 + $0x34] sm:$0xf]
      %v478 = vld [vmem:[%s443 + $0x38] sm:$0xf]
      %v479 = vld [vmem:[%s443 + $0x3c] sm:$0xf]
      %v480 = vunpack.c.l.bf16 %v464
      %v481 = vunpack.c.l.bf16 %v465
      %v482 = vunpack.c.l.bf16 %v466
      %v483 = vunpack.c.l.bf16 %v467
      %v484 = vunpack.c.l.bf16 %v468
      %v485 = vunpack.c.l.bf16 %v469
      %v486 = vunpack.c.l.bf16 %v470
      %v487 = vunpack.c.l.bf16 %v471
      %v488 = vunpack.c.l.bf16 %v472
      %v489 = vunpack.c.l.bf16 %v473
      %v490 = vunpack.c.l.bf16 %v474
      %v491 = vunpack.c.l.bf16 %v475
      %v492 = vunpack.c.l.bf16 %v476
      %v493 = vunpack.c.l.bf16 %v477
      %v494 = vunpack.c.l.bf16 %v478
      %v495 = vunpack.c.l.bf16 %v479
      %v496 = vld [vmem:[%s449] sm:$0xf]
      %v497 = vld [vmem:[%s449 + $0x4] sm:$0xf]
      %v498 = vld [vmem:[%s449 + $0x8] sm:$0xf]
      %v499 = vld [vmem:[%s449 + $0xc] sm:$0xf]
      %v500 = vld [vmem:[%s449 + $0x10] sm:$0xf]
      %v501 = vld [vmem:[%s449 + $0x14] sm:$0xf]
      %v502 = vld [vmem:[%s449 + $0x18] sm:$0xf]
      %v503 = vld [vmem:[%s449 + $0x1c] sm:$0xf]
      %v504 = vld [vmem:[%s449 + $0x20] sm:$0xf]
      %v505 = vld [vmem:[%s449 + $0x24] sm:$0xf]
      %v506 = vld [vmem:[%s449 + $0x28] sm:$0xf]
      %v507 = vld [vmem:[%s449 + $0x2c] sm:$0xf]
      %v508 = vld [vmem:[%s449 + $0x30] sm:$0xf]
      %v509 = vld [vmem:[%s449 + $0x34] sm:$0xf]
      %v510 = vld [vmem:[%s449 + $0x38] sm:$0xf]
      %v511 = vld [vmem:[%s449 + $0x3c] sm:$0xf]
      %v512 = vunpack.c.l.bf16 %v496
      %v513 = vunpack.c.l.bf16 %v497
      %v514 = vunpack.c.l.bf16 %v498
      %v515 = vunpack.c.l.bf16 %v499
      %v516 = vunpack.c.l.bf16 %v500
      %v517 = vunpack.c.l.bf16 %v501
      %v518 = vunpack.c.l.bf16 %v502
      %v519 = vunpack.c.l.bf16 %v503
      %v520 = vunpack.c.l.bf16 %v504
      %v521 = vunpack.c.l.bf16 %v505
      %v522 = vunpack.c.l.bf16 %v506
      %v523 = vunpack.c.l.bf16 %v507
      %v524 = vunpack.c.l.bf16 %v508
      %v525 = vunpack.c.l.bf16 %v509
      %v526 = vunpack.c.l.bf16 %v510
      %v527 = vunpack.c.l.bf16 %v511
      %v528 = vmul.f32 %v480, %v512
      %v529 = vmul.f32 %v481, %v513
      %v530 = vmul.f32 %v482, %v514
      %v531 = vmul.f32 %v483, %v515
      %v532 = vmul.f32 %v484, %v516
      %v533 = vmul.f32 %v485, %v517
      %v534 = vmul.f32 %v486, %v518
      %v535 = vmul.f32 %v487, %v519
      %v536 = vmul.f32 %v488, %v520
      %v537 = vmul.f32 %v489, %v521
      %v538 = vmul.f32 %v490, %v522
      %v539 = vmul.f32 %v491, %v523
      %v540 = vmul.f32 %v492, %v524
      %v541 = vmul.f32 %v493, %v525
      %v542 = vmul.f32 %v494, %v526
      %v543 = vmul.f32 %v495, %v527
      %v544 = vld [vmem:[%s455] sm:$0xf]
      %v545 = vld [vmem:[%s455 + $0x4] sm:$0xf]
      %v546 = vld [vmem:[%s455 + $0x8] sm:$0xf]
      %v547 = vld [vmem:[%s455 + $0xc] sm:$0xf]
      %v548 = vld [vmem:[%s455 + $0x10] sm:$0xf]
      %v549 = vld [vmem:[%s455 + $0x14] sm:$0xf]
      %v550 = vld [vmem:[%s455 + $0x18] sm:$0xf]
      %v551 = vld [vmem:[%s455 + $0x1c] sm:$0xf]
      %v552 = vld [vmem:[%s455 + $0x20] sm:$0xf]
      %v553 = vld [vmem:[%s455 + $0x24] sm:$0xf]
      %v554 = vld [vmem:[%s455 + $0x28] sm:$0xf]
      %v555 = vld [vmem:[%s455 + $0x2c] sm:$0xf]
      %v556 = vld [vmem:[%s455 + $0x30] sm:$0xf]
      %v557 = vld [vmem:[%s455 + $0x34] sm:$0xf]
      %v558 = vld [vmem:[%s455 + $0x38] sm:$0xf]
      %v559 = vld [vmem:[%s455 + $0x3c] sm:$0xf]
      %v560 = vld [vmem:[%s3] sm:$0xf]
      %v561 = vld [vmem:[%s3 + $0x4] sm:$0xf]
      %v562 = vld [vmem:[%s3 + $0x8] sm:$0xf]
      %v563 = vld [vmem:[%s3 + $0xc] sm:$0xf]
      %v564 = vld [vmem:[%s3 + $0x10] sm:$0xf]
      %v565 = vld [vmem:[%s3 + $0x14] sm:$0xf]
      %v566 = vld [vmem:[%s3 + $0x18] sm:$0xf]
      %v567 = vld [vmem:[%s3 + $0x1c] sm:$0xf]
      %v568 = vld [vmem:[%s4] sm:$0x1]
      %v570 = vlaneseq
      %v571 = vshrl.u32 %v570, 7
      %v572 = vsub.s32 0, %v571
      %v573 = vrot.slane %v568, %v572
      %v591 = vunpack.c.l.b16 %v544
      %v592 = vunpack.c.l.b16 %v545
      %v593 = vunpack.c.l.b16 %v546
      %v594 = vunpack.c.l.b16 %v547
      %v595 = vunpack.c.l.b16 %v548
      %v596 = vunpack.c.l.b16 %v549
      %v597 = vunpack.c.l.b16 %v550
      %v598 = vunpack.c.l.b16 %v551
      %v599 = vunpack.c.l.b16 %v552
      %v600 = vunpack.c.l.b16 %v553
      %v601 = vunpack.c.l.b16 %v554
      %v602 = vunpack.c.l.b16 %v555
      %v603 = vunpack.c.l.b16 %v556
      %v604 = vunpack.c.l.b16 %v557
      %v605 = vunpack.c.l.b16 %v558
      %v606 = vunpack.c.l.b16 %v559
      %v607 = vpack.c.b16 %v592, %v591
      %v608 = vpack.c.b16 %v594, %v593
      %v609 = vpack.c.b16 %v596, %v595
      %v610 = vpack.c.b16 %v598, %v597
      %v611 = vpack.c.b16 %v600, %v599
      %v612 = vpack.c.b16 %v602, %v601
      %v613 = vpack.c.b16 %v604, %v603
      %v614 = vpack.c.b16 %v606, %v605
      %v623 = vunpack.c.l.b16 %v560
      %v624 = vunpack.c.l.b16 %v561
      %v625 = vunpack.c.l.b16 %v562
      %v626 = vunpack.c.l.b16 %v563
      %v627 = vunpack.c.l.b16 %v564
      %v628 = vunpack.c.l.b16 %v565
      %v629 = vunpack.c.l.b16 %v566
      %v630 = vunpack.c.l.b16 %v567
      %v631 = vpack.c.b16 %v624, %v623
      %v632 = vpack.c.b16 %v626, %v625
      %v633 = vpack.c.b16 %v628, %v627
      %v634 = vpack.c.b16 %v630, %v629
      %vm639 = vcmask 523264
      %v641 = vsel %vm639, %v607, 0
      %v644 = vsel %vm639, %v608, 0
      %v647 = vsel %vm639, %v609, 0
      %v650 = vsel %vm639, %v610, 0
      %v653 = vsel %vm639, %v611, 0
      %v656 = vsel %vm639, %v612, 0
      %v659 = vsel %vm639, %v613, 0
      %v662 = vsel %vm639, %v614, 0
      %664 = vmatprep.subr.bf16.mxu0 0
      %665 = vmatpush1.bf16.msra.mxu0 %v631
      %666 = vmatprep.subr.bf16.mxu0 0
      %667 = vmatpush1.bf16.msra.mxu0 %v632
      %668 = vmatprep.subr.bf16.mxu0 0
      %669 = vmatpush1.bf16.msra.mxu0 %v633
      %670 = vmatprep.subr.bf16.mxu0 0
      %671 = vmatpush1.bf16.msra.mxu0 %v634
      %672 = vmatprep.subr.bf16.mxu0 0
      %673 = vmatpush1.bf16.msra.mxu0 0
      %674 = vmatprep.subr.bf16.mxu0 0
      %675 = vmatpush1.bf16.msra.mxu0 0
      %676 = vmatprep.subr.bf16.mxu0 0
      %677 = vmatpush1.bf16.msra.mxu0 0
      %678 = vmatprep.subr.bf16.mxu0 0
      %679 = vmatpush1.bf16.msra.mxu0 0
      %680 = vmatprep.subr.bf16.mxu0 0
      %681 = vmatpush1.bf16.msra.mxu0 0
      %682 = vmatprep.subr.bf16.mxu0 0
      %683 = vmatpush1.bf16.msra.mxu0 0
      %684 = vmatprep.subr.bf16.mxu0 0
      %685 = vmatpush1.bf16.msra.mxu0 0
      %686 = vmatprep.subr.bf16.mxu0 0
      %687 = vmatpush1.bf16.msra.mxu0 0
      %688 = vmatprep.subr.bf16.mxu0 0
      %689 = vmatpush1.bf16.msra.mxu0 0
      %690 = vmatprep.subr.bf16.mxu0 0
      %691 = vmatpush1.bf16.msra.mxu0 0
      %692 = vmatprep.subr.bf16.mxu0 0
      %693 = vmatpush1.bf16.msra.mxu0 0
      %694 = vmatprep.subr.bf16.mxu0 0
      %695 = vmatpush1.bf16.msra.mxu0 0
      %696 = vmatprep.mubr.bf16.mxu0 0
      %697 = vmatmul.mubr.bf16.gmra.mrb[0].mxu0 %v641
      %v698 = vpop.f32.mrb[0].mxu0
      %v699 = vadd.f32 %v573, %v698
      %v700 = vpop.f32.mrb[0].mxu0
      %v701 = vpop.f32.mrb[0].mxu0
      %v702 = vadd.f32 %v573, %v701
      %v703 = vpop.f32.mrb[0].mxu0
      %704 = vmatprep.mubr.bf16.mxu0 0
      %705 = vmatmul.mubr.bf16.gmra.mrb[0].mxu0 %v644
      %v706 = vpop.f32.mrb[0].mxu0
      %v707 = vadd.f32 %v573, %v706
      %v708 = vpop.f32.mrb[0].mxu0
      %v709 = vpop.f32.mrb[0].mxu0
      %v710 = vadd.f32 %v573, %v709
      %v711 = vpop.f32.mrb[0].mxu0
      %712 = vmatprep.mubr.bf16.mxu0 0
      %713 = vmatmul.mubr.bf16.gmra.mrb[0].mxu0 %v647
      %v714 = vpop.f32.mrb[0].mxu0
      %v715 = vadd.f32 %v573, %v714
      %v716 = vpop.f32.mrb[0].mxu0
      %v717 = vpop.f32.mrb[0].mxu0
      %v718 = vadd.f32 %v573, %v717
      %v719 = vpop.f32.mrb[0].mxu0
      %720 = vmatprep.mubr.bf16.mxu0 0
      %721 = vmatmul.mubr.bf16.gmra.mrb[0].mxu0 %v650
      %v722 = vpop.f32.mrb[0].mxu0
      %v723 = vadd.f32 %v573, %v722
      %v724 = vpop.f32.mrb[0].mxu0
      %v725 = vpop.f32.mrb[0].mxu0
      %v726 = vadd.f32 %v573, %v725
      %v727 = vpop.f32.mrb[0].mxu0
      %728 = vmatprep.mubr.bf16.mxu0 0
      %729 = vmatmul.mubr.bf16.gmra.mrb[0].mxu0 %v653
      %v730 = vpop.f32.mrb[0].mxu0
      %v731 = vadd.f32 %v573, %v730
      %v732 = vpop.f32.mrb[0].mxu0
      %v733 = vpop.f32.mrb[0].mxu0
      %v734 = vadd.f32 %v573, %v733
      %v735 = vpop.f32.mrb[0].mxu0
      %736 = vmatprep.mubr.bf16.mxu0 0
      %737 = vmatmul.mubr.bf16.gmra.mrb[0].mxu0 %v656
      %v738 = vpop.f32.mrb[0].mxu0
      %v739 = vadd.f32 %v573, %v738
      %v740 = vpop.f32.mrb[0].mxu0
      %v741 = vpop.f32.mrb[0].mxu0
      %v742 = vadd.f32 %v573, %v741
      %v743 = vpop.f32.mrb[0].mxu0
      %744 = vmatprep.mubr.bf16.mxu0 0
      %745 = vmatmul.mubr.bf16.gmra.mrb[0].mxu0 %v659
      %v746 = vpop.f32.mrb[0].mxu0
      %v747 = vadd.f32 %v573, %v746
      %v748 = vpop.f32.mrb[0].mxu0
      %v749 = vpop.f32.mrb[0].mxu0
      %v750 = vadd.f32 %v573, %v749
      %v751 = vpop.f32.mrb[0].mxu0
      %752 = vmatprep.mubr.bf16.mxu0 0
      %753 = vmatmul.mubr.bf16.gmra.mrb[0].mxu0 %v662
      %v754 = vpop.f32.mrb[0].mxu0
      %v755 = vadd.f32 %v573, %v754
      %v756 = vpop.f32.mrb[0].mxu0
      %v757 = vpop.f32.mrb[0].mxu0
      %v758 = vadd.f32 %v573, %v757
      %v759 = vpop.f32.mrb[0].mxu0
      %760 = vdwg.mxu0
      %v761 = vmax.f32 %v699, 0.0
      %v762 = vmax.f32 %v702, 0.0
      %v763 = vmax.f32 %v707, 0.0
      %v764 = vmax.f32 %v710, 0.0
      %v765 = vmax.f32 %v715, 0.0
      %v766 = vmax.f32 %v718, 0.0
      %v767 = vmax.f32 %v723, 0.0
      %v768 = vmax.f32 %v726, 0.0
      %v769 = vmax.f32 %v731, 0.0
      %v770 = vmax.f32 %v734, 0.0
      %v771 = vmax.f32 %v739, 0.0
      %v772 = vmax.f32 %v742, 0.0
      %v773 = vmax.f32 %v747, 0.0
      %v774 = vmax.f32 %v750, 0.0
      %v775 = vmax.f32 %v755, 0.0
      %v776 = vmax.f32 %v758, 0.0
      %v777 = vpack.c.bf16 %v762, %v761
      %v778 = vpack.c.bf16 %v764, %v763
      %v779 = vpack.c.bf16 %v766, %v765
      %v780 = vpack.c.bf16 %v768, %v767
      %v781 = vpack.c.bf16 %v770, %v769
      %v782 = vpack.c.bf16 %v772, %v771
      %v783 = vpack.c.bf16 %v774, %v773
      %v784 = vpack.c.bf16 %v776, %v775
      %v785 = vld [vmem:[%s5] sm:$0xf]
      %v786 = vld [vmem:[%s5 + $0x4] sm:$0xf]
      %v787 = vld [vmem:[%s5 + $0x8] sm:$0xf]
      %v788 = vld [vmem:[%s5 + $0xc] sm:$0xf]
      %v789 = vld [vmem:[%s6] sm:$0x1]
      %v791 = vlaneseq
      %v792 = vshrl.u32 %v791, 7
      %v793 = vsub.s32 0, %v792
      %v794 = vrot.slane %v789, %v793
      %v800 = vunpack.c.l.b16 %v785
      %v801 = vunpack.c.l.b16 %v786
      %v802 = vunpack.c.l.b16 %v787
      %v803 = vunpack.c.l.b16 %v788
      %v804 = vpack.c.b16 %v801, %v800
      %v805 = vpack.c.b16 %v803, %v802
      %vm808 = vcmask 261120
      %v810 = vsel %vm808, %v777, 0
      %v813 = vsel %vm808, %v778, 0
      %v816 = vsel %vm808, %v779, 0
      %v819 = vsel %vm808, %v780, 0
      %v822 = vsel %vm808, %v781, 0
      %v825 = vsel %vm808, %v782, 0
      %v828 = vsel %vm808, %v783, 0
      %v831 = vsel %vm808, %v784, 0
      %833 = vmatprep.subr.bf16.mxu0 0
      %834 = vmatpush1.bf16.msra.mxu0 %v804
      %835 = vmatprep.subr.bf16.mxu0 0
      %836 = vmatpush1.bf16.msra.mxu0 %v805
      %837 = vmatprep.subr.bf16.mxu0 0
      %838 = vmatpush1.bf16.msra.mxu0 0
      %839 = vmatprep.subr.bf16.mxu0 0
      %840 = vmatpush1.bf16.msra.mxu0 0
      %841 = vmatprep.subr.bf16.mxu0 0
      %842 = vmatpush1.bf16.msra.mxu0 0
      %843 = vmatprep.subr.bf16.mxu0 0
      %844 = vmatpush1.bf16.msra.mxu0 0
      %845 = vmatprep.subr.bf16.mxu0 0
      %846 = vmatpush1.bf16.msra.mxu0 0
      %847 = vmatprep.subr.bf16.mxu0 0
      %848 = vmatpush1.bf16.msra.mxu0 0
      %849 = vmatprep.subr.bf16.mxu0 0
      %850 = vmatpush1.bf16.msra.mxu0 0
      %851 = vmatprep.subr.bf16.mxu0 0
      %852 = vmatpush1.bf16.msra.mxu0 0
      %853 = vmatprep.subr.bf16.mxu0 0
      %854 = vmatpush1.bf16.msra.mxu0 0
      %855 = vmatprep.subr.bf16.mxu0 0
      %856 = vmatpush1.bf16.msra.mxu0 0
      %857 = vmatprep.subr.bf16.mxu0 0
      %858 = vmatpush1.bf16.msra.mxu0 0
      %859 = vmatprep.subr.bf16.mxu0 0
      %860 = vmatpush1.bf16.msra.mxu0 0
      %861 = vmatprep.subr.bf16.mxu0 0
      %862 = vmatpush1.bf16.msra.mxu0 0
      %863 = vmatprep.subr.bf16.mxu0 0
      %864 = vmatpush1.bf16.msra.mxu0 0
      %865 = vmatprep.mubr.bf16.mxu0 0
      %866 = vmatmul.mubr.bf16.gmra.mrb[0].mxu0 %v810
      %v867 = vpop.f32.mrb[0].mxu0
      %v868 = vadd.f32 %v794, %v867
      %v869 = vpop.f32.mrb[0].mxu0
      %v870 = vpop.f32.mrb[0].mxu0
      %v871 = vadd.f32 %v794, %v870
      %v872 = vpop.f32.mrb[0].mxu0
      %873 = vmatprep.mubr.bf16.mxu0 0
      %874 = vmatmul.mubr.bf16.gmra.mrb[0].mxu0 %v813
      %v875 = vpop.f32.mrb[0].mxu0
      %v876 = vadd.f32 %v794, %v875
      %v877 = vpop.f32.mrb[0].mxu0
      %v878 = vpop.f32.mrb[0].mxu0
      %v879 = vadd.f32 %v794, %v878
      %v880 = vpop.f32.mrb[0].mxu0
      %881 = vmatprep.mubr.bf16.mxu0 0
      %882 = vmatmul.mubr.bf16.gmra.mrb[0].mxu0 %v816
      %v883 = vpop.f32.mrb[0].mxu0
      %v884 = vadd.f32 %v794, %v883
      %v885 = vpop.f32.mrb[0].mxu0
      %v886 = vpop.f32.mrb[0].mxu0
      %v887 = vadd.f32 %v794, %v886
      %v888 = vpop.f32.mrb[0].mxu0
      %889 = vmatprep.mubr.bf16.mxu0 0
      %890 = vmatmul.mubr.bf16.gmra.mrb[0].mxu0 %v819
      %v891 = vpop.f32.mrb[0].mxu0
      %v892 = vadd.f32 %v794, %v891
      %v893 = vpop.f32.mrb[0].mxu0
      %v894 = vpop.f32.mrb[0].mxu0
      %v895 = vadd.f32 %v794, %v894
      %v896 = vpop.f32.mrb[0].mxu0
      %897 = vmatprep.mubr.bf16.mxu0 0
      %898 = vmatmul.mubr.bf16.gmra.mrb[0].mxu0 %v822
      %v899 = vpop.f32.mrb[0].mxu0
      %v900 = vadd.f32 %v794, %v899
      %v901 = vpop.f32.mrb[0].mxu0
      %v902 = vpop.f32.mrb[0].mxu0
      %v903 = vadd.f32 %v794, %v902
      %v904 = vpop.f32.mrb[0].mxu0
      %905 = vmatprep.mubr.bf16.mxu0 0
      %906 = vmatmul.mubr.bf16.gmra.mrb[0].mxu0 %v825
      %v907 = vpop.f32.mrb[0].mxu0
      %v908 = vadd.f32 %v794, %v907
      %v909 = vpop.f32.mrb[0].mxu0
      %v910 = vpop.f32.mrb[0].mxu0
      %v911 = vadd.f32 %v794, %v910
      %v912 = vpop.f32.mrb[0].mxu0
      %913 = vmatprep.mubr.bf16.mxu0 0
      %914 = vmatmul.mubr.bf16.gmra.mrb[0].mxu0 %v828
      %v915 = vpop.f32.mrb[0].mxu0
      %v916 = vadd.f32 %v794, %v915
      %v917 = vpop.f32.mrb[0].mxu0
      %v918 = vpop.f32.mrb[0].mxu0
      %v919 = vadd.f32 %v794, %v918
      %v920 = vpop.f32.mrb[0].mxu0
      %921 = vmatprep.mubr.bf16.mxu0 0
      %922 = vmatmul.mubr.bf16.gmra.mrb[0].mxu0 %v831
      %v923 = vpop.f32.mrb[0].mxu0
      %v924 = vadd.f32 %v794, %v923
      %v925 = vpop.f32.mrb[0].mxu0
      %v926 = vpop.f32.mrb[0].mxu0
      %v927 = vadd.f32 %v794, %v926
      %v928 = vpop.f32.mrb[0].mxu0
      %929 = vdwg.mxu0
      %v930 = vmax.f32 %v868, 0.0
      %v931 = vmax.f32 %v871, 0.0
      %v932 = vmax.f32 %v876, 0.0
      %v933 = vmax.f32 %v879, 0.0
      %v934 = vmax.f32 %v884, 0.0
      %v935 = vmax.f32 %v887, 0.0
      %v936 = vmax.f32 %v892, 0.0
      %v937 = vmax.f32 %v895, 0.0
      %v938 = vmax.f32 %v900, 0.0
      %v939 = vmax.f32 %v903, 0.0
      %v940 = vmax.f32 %v908, 0.0
      %v941 = vmax.f32 %v911, 0.0
      %v942 = vmax.f32 %v916, 0.0
      %v943 = vmax.f32 %v919, 0.0
      %v944 = vmax.f32 %v924, 0.0
      %v945 = vmax.f32 %v927, 0.0
      %v946 = vpack.c.bf16 %v931, %v930
      %v947 = vpack.c.bf16 %v933, %v932
      %v948 = vpack.c.bf16 %v935, %v934
      %v949 = vpack.c.bf16 %v937, %v936
      %v950 = vpack.c.bf16 %v939, %v938
      %v951 = vpack.c.bf16 %v941, %v940
      %v952 = vpack.c.bf16 %v943, %v942
      %v953 = vpack.c.bf16 %v945, %v944
      %v954 = vld [vmem:[%s7] sm:$0xf]
      %v955 = vld [vmem:[%s7 + $0x4] sm:$0xf]
      %v956 = vld [vmem:[%s8] sm:$0x1]
      %v958 = vlaneseq
      %v959 = vshrl.u32 %v958, 7
      %v960 = vsub.s32 0, %v959
      %v961 = vrot.slane %v956, %v960
      %v965 = vunpack.c.l.b16 %v954
      %v966 = vunpack.c.l.b16 %v955
      %v967 = vpack.c.b16 %v966, %v965
      %vm969 = vcmask 130048
      %v971 = vsel %vm969, %v946, 0
      %v974 = vsel %vm969, %v947, 0
      %v977 = vsel %vm969, %v948, 0
      %v980 = vsel %vm969, %v949, 0
      %v983 = vsel %vm969, %v950, 0
      %v986 = vsel %vm969, %v951, 0
      %v989 = vsel %vm969, %v952, 0
      %v992 = vsel %vm969, %v953, 0
      %994 = vmatprep.subr.bf16.mxu0 0
      %995 = vmatpush1.bf16.msra.mxu0 %v967
      %996 = vmatprep.subr.bf16.mxu0 0
      %997 = vmatpush1.bf16.msra.mxu0 0
      %998 = vmatprep.subr.bf16.mxu0 0
      %999 = vmatpush1.bf16.msra.mxu0 0
      %1000 = vmatprep.subr.bf16.mxu0 0
      %1001 = vmatpush1.bf16.msra.mxu0 0
      %1002 = vmatprep.subr.bf16.mxu0 0
      %1003 = vmatpush1.bf16.msra.mxu0 0
      %1004 = vmatprep.subr.bf16.mxu0 0
      %1005 = vmatpush1.bf16.msra.mxu0 0
      %1006 = vmatprep.subr.bf16.mxu0 0
      %1007 = vmatpush1.bf16.msra.mxu0 0
      %1008 = vmatprep.subr.bf16.mxu0 0
      %1009 = vmatpush1.bf16.msra.mxu0 0
      %1010 = vmatprep.subr.bf16.mxu0 0
      %1011 = vmatpush1.bf16.msra.mxu0 0
      %1012 = vmatprep.subr.bf16.mxu0 0
      %1013 = vmatpush1.bf16.msra.mxu0 0
      %1014 = vmatprep.subr.bf16.mxu0 0
      %1015 = vmatpush1.bf16.msra.mxu0 0
      %1016 = vmatprep.subr.bf16.mxu0 0
      %1017 = vmatpush1.bf16.msra.mxu0 0
      %1018 = vmatprep.subr.bf16.mxu0 0
      %1019 = vmatpush1.bf16.msra.mxu0 0
      %1020 = vmatprep.subr.bf16.mxu0 0
      %1021 = vmatpush1.bf16.msra.mxu0 0
      %1022 = vmatprep.subr.bf16.mxu0 0
      %1023 = vmatpush1.bf16.msra.mxu0 0
      %1024 = vmatprep.subr.bf16.mxu0 0
      %1025 = vmatpush1.bf16.msra.mxu0 0
      %1026 = vmatprep.mubr.bf16.mxu0 0
      %1027 = vmatmul.mubr.bf16.gmra.mrb[0].mxu0 %v971
      %v1028 = vpop.f32.mrb[0].mxu0
      %v1029 = vadd.f32 %v961, %v1028
      %v1030 = vpop.f32.mrb[0].mxu0
      %v1031 = vpop.f32.mrb[0].mxu0
      %v1032 = vadd.f32 %v961, %v1031
      %v1033 = vpop.f32.mrb[0].mxu0
      %1034 = vmatprep.mubr.bf16.mxu0 0
      %1035 = vmatmul.mubr.bf16.gmra.mrb[0].mxu0 %v974
      %v1036 = vpop.f32.mrb[0].mxu0
      %v1037 = vadd.f32 %v961, %v1036
      %v1038 = vpop.f32.mrb[0].mxu0
      %v1039 = vpop.f32.mrb[0].mxu0
      %v1040 = vadd.f32 %v961, %v1039
      %v1041 = vpop.f32.mrb[0].mxu0
      %1042 = vmatprep.mubr.bf16.mxu0 0
      %1043 = vmatmul.mubr.bf16.gmra.mrb[0].mxu0 %v977
      %v1044 = vpop.f32.mrb[0].mxu0
      %v1045 = vadd.f32 %v961, %v1044
      %v1046 = vpop.f32.mrb[0].mxu0
      %v1047 = vpop.f32.mrb[0].mxu0
      %v1048 = vadd.f32 %v961, %v1047
      %v1049 = vpop.f32.mrb[0].mxu0
      %1050 = vmatprep.mubr.bf16.mxu0 0
      %1051 = vmatmul.mubr.bf16.gmra.mrb[0].mxu0 %v980
      %v1052 = vpop.f32.mrb[0].mxu0
      %v1053 = vadd.f32 %v961, %v1052
      %v1054 = vpop.f32.mrb[0].mxu0
      %v1055 = vpop.f32.mrb[0].mxu0
      %v1056 = vadd.f32 %v961, %v1055
      %v1057 = vpop.f32.mrb[0].mxu0
      %1058 = vmatprep.mubr.bf16.mxu0 0
      %1059 = vmatmul.mubr.bf16.gmra.mrb[0].mxu0 %v983
      %v1060 = vpop.f32.mrb[0].mxu0
      %v1061 = vadd.f32 %v961, %v1060
      %v1062 = vpop.f32.mrb[0].mxu0
      %v1063 = vpop.f32.mrb[0].mxu0
      %v1064 = vadd.f32 %v961, %v1063
      %v1065 = vpop.f32.mrb[0].mxu0
      %1066 = vmatprep.mubr.bf16.mxu0 0
      %1067 = vmatmul.mubr.bf16.gmra.mrb[0].mxu0 %v986
      %v1068 = vpop.f32.mrb[0].mxu0
      %v1069 = vadd.f32 %v961, %v1068
      %v1070 = vpop.f32.mrb[0].mxu0
      %v1071 = vpop.f32.mrb[0].mxu0
      %v1072 = vadd.f32 %v961, %v1071
      %v1073 = vpop.f32.mrb[0].mxu0
      %1074 = vmatprep.mubr.bf16.mxu0 0
      %1075 = vmatmul.mubr.bf16.gmra.mrb[0].mxu0 %v989
      %v1076 = vpop.f32.mrb[0].mxu0
      %v1077 = vadd.f32 %v961, %v1076
      %v1078 = vpop.f32.mrb[0].mxu0
      %v1079 = vpop.f32.mrb[0].mxu0
      %v1080 = vadd.f32 %v961, %v1079
      %v1081 = vpop.f32.mrb[0].mxu0
      %1082 = vmatprep.mubr.bf16.mxu0 0
      %1083 = vmatmul.mubr.bf16.gmra.mrb[0].mxu0 %v992
      %v1084 = vpop.f32.mrb[0].mxu0
      %v1085 = vadd.f32 %v961, %v1084
      %v1086 = vpop.f32.mrb[0].mxu0
      %v1087 = vpop.f32.mrb[0].mxu0
      %v1088 = vadd.f32 %v961, %v1087
      %v1089 = vpop.f32.mrb[0].mxu0
      %1090 = vdwg.mxu0
      %v1091 = vld [vmem:[%s9] sm:$0x1]
      %v1093 = vlaneseq
      %v1094 = vshrl.u32 %v1093, 7
      %v1095 = vsub.s32 0, %v1094
      %v1096 = vrot.slane %v1091, %v1095
      %v1098 = vmul.f32 %v528, %v1096
      %v1099 = vmul.f32 %v529, %v1096
      %v1100 = vmul.f32 %v530, %v1096
      %v1101 = vmul.f32 %v531, %v1096
      %v1102 = vmul.f32 %v532, %v1096
      %v1103 = vmul.f32 %v533, %v1096
      %v1104 = vmul.f32 %v534, %v1096
      %v1105 = vmul.f32 %v535, %v1096
      %v1106 = vmul.f32 %v536, %v1096
      %v1107 = vmul.f32 %v537, %v1096
      %v1108 = vmul.f32 %v538, %v1096
      %v1109 = vmul.f32 %v539, %v1096
      %v1110 = vmul.f32 %v540, %v1096
      %v1111 = vmul.f32 %v541, %v1096
      %v1112 = vmul.f32 %v542, %v1096
      %v1113 = vmul.f32 %v543, %v1096
      %v1114 = vsel %vm808, %v1098, 0.0
      %1115 = vadd.xlane.f32.xlu0 %v1114
      %v1116 = vpop.xlane.xlu0 %1115
      %v1117 = vsel %vm808, %v1099, 0.0
      %1118 = vadd.xlane.f32.xlu0 %v1117
      %v1119 = vpop.xlane.xlu0 %1118
      %v1120 = vsel %vm808, %v1100, 0.0
      %1121 = vadd.xlane.f32.xlu0 %v1120
      %v1122 = vpop.xlane.xlu0 %1121
      %v1123 = vsel %vm808, %v1101, 0.0
      %1124 = vadd.xlane.f32.xlu0 %v1123
      %v1125 = vpop.xlane.xlu0 %1124
      %v1126 = vsel %vm808, %v1102, 0.0
      %1127 = vadd.xlane.f32.xlu0 %v1126
      %v1128 = vpop.xlane.xlu0 %1127
      %v1129 = vsel %vm808, %v1103, 0.0
      %1130 = vadd.xlane.f32.xlu0 %v1129
      %v1131 = vpop.xlane.xlu0 %1130
      %v1132 = vsel %vm808, %v1104, 0.0
      %1133 = vadd.xlane.f32.xlu0 %v1132
      %v1134 = vpop.xlane.xlu0 %1133
      %v1135 = vsel %vm808, %v1105, 0.0
      %1136 = vadd.xlane.f32.xlu0 %v1135
      %v1137 = vpop.xlane.xlu0 %1136
      %v1138 = vsel %vm808, %v1106, 0.0
      %1139 = vadd.xlane.f32.xlu0 %v1138
      %v1140 = vpop.xlane.xlu0 %1139
      %v1141 = vsel %vm808, %v1107, 0.0
      %1142 = vadd.xlane.f32.xlu0 %v1141
      %v1143 = vpop.xlane.xlu0 %1142
      %v1144 = vsel %vm808, %v1108, 0.0
      %1145 = vadd.xlane.f32.xlu0 %v1144
      %v1146 = vpop.xlane.xlu0 %1145
      %v1147 = vsel %vm808, %v1109, 0.0
      %1148 = vadd.xlane.f32.xlu0 %v1147
      %v1149 = vpop.xlane.xlu0 %1148
      %v1150 = vsel %vm808, %v1110, 0.0
      %1151 = vadd.xlane.f32.xlu0 %v1150
      %v1152 = vpop.xlane.xlu0 %1151
      %v1153 = vsel %vm808, %v1111, 0.0
      %1154 = vadd.xlane.f32.xlu0 %v1153
      %v1155 = vpop.xlane.xlu0 %1154
      %v1156 = vsel %vm808, %v1112, 0.0
      %1157 = vadd.xlane.f32.xlu0 %v1156
      %v1158 = vpop.xlane.xlu0 %1157
      %v1159 = vsel %vm808, %v1113, 0.0
      %1160 = vadd.xlane.f32.xlu0 %v1159
      %v1161 = vpop.xlane.xlu0 %1160
      %v1162 = vld [vmem:[%s10] sm:$0x1]
      %v1164 = vlaneseq
      %v1165 = vshrl.u32 %v1164, 7
      %v1166 = vsub.s32 0, %v1165
      %v1167 = vrot.slane %v1162, %v1166
      %v1169 = vmul.f32 %v1029, %v1167
      %v1170 = vmul.f32 %v1032, %v1167
      %v1171 = vmul.f32 %v1037, %v1167
      %v1172 = vmul.f32 %v1040, %v1167
      %v1173 = vmul.f32 %v1045, %v1167
      %v1174 = vmul.f32 %v1048, %v1167
      %v1175 = vmul.f32 %v1053, %v1167
      %v1176 = vmul.f32 %v1056, %v1167
      %v1177 = vmul.f32 %v1061, %v1167
      %v1178 = vmul.f32 %v1064, %v1167
      %v1179 = vmul.f32 %v1069, %v1167
      %v1180 = vmul.f32 %v1072, %v1167
      %v1181 = vmul.f32 %v1077, %v1167
      %v1182 = vmul.f32 %v1080, %v1167
      %v1183 = vmul.f32 %v1085, %v1167
      %v1184 = vmul.f32 %v1088, %v1167
      %vm1185 = vcmask 64512
      %v1186 = vsel %vm1185, %v1169, 0.0
      %1187 = vadd.xlane.f32.xlu0 %v1186
      %v1188 = vpop.xlane.xlu0 %1187
      %v1189 = vsel %vm1185, %v1170, 0.0
      %1190 = vadd.xlane.f32.xlu0 %v1189
      %v1191 = vpop.xlane.xlu0 %1190
      %v1192 = vsel %vm1185, %v1171, 0.0
      %1193 = vadd.xlane.f32.xlu0 %v1192
      %v1194 = vpop.xlane.xlu0 %1193
      %v1195 = vsel %vm1185, %v1172, 0.0
      %1196 = vadd.xlane.f32.xlu0 %v1195
      %v1197 = vpop.xlane.xlu0 %1196
      %v1198 = vsel %vm1185, %v1173, 0.0
      %1199 = vadd.xlane.f32.xlu0 %v1198
      %v1200 = vpop.xlane.xlu0 %1199
      %v1201 = vsel %vm1185, %v1174, 0.0
      %1202 = vadd.xlane.f32.xlu0 %v1201
      %v1203 = vpop.xlane.xlu0 %1202
      %v1204 = vsel %vm1185, %v1175, 0.0
      %1205 = vadd.xlane.f32.xlu0 %v1204
      %v1206 = vpop.xlane.xlu0 %1205
      %v1207 = vsel %vm1185, %v1176, 0.0
      %1208 = vadd.xlane.f32.xlu0 %v1207
      %v1209 = vpop.xlane.xlu0 %1208
      %v1210 = vsel %vm1185, %v1177, 0.0
      %1211 = vadd.xlane.f32.xlu0 %v1210
      %v1212 = vpop.xlane.xlu0 %1211
      %v1213 = vsel %vm1185, %v1178, 0.0
      %1214 = vadd.xlane.f32.xlu0 %v1213
      %v1215 = vpop.xlane.xlu0 %1214
      %v1216 = vsel %vm1185, %v1179, 0.0
      %1217 = vadd.xlane.f32.xlu0 %v1216
      %v1218 = vpop.xlane.xlu0 %1217
      %v1219 = vsel %vm1185, %v1180, 0.0
      %1220 = vadd.xlane.f32.xlu0 %v1219
      %v1221 = vpop.xlane.xlu0 %1220
      %v1222 = vsel %vm1185, %v1181, 0.0
      %1223 = vadd.xlane.f32.xlu0 %v1222
      %v1224 = vpop.xlane.xlu0 %1223
      %v1225 = vsel %vm1185, %v1182, 0.0
      %1226 = vadd.xlane.f32.xlu0 %v1225
      %v1227 = vpop.xlane.xlu0 %1226
      %v1228 = vsel %vm1185, %v1183, 0.0
      %1229 = vadd.xlane.f32.xlu0 %v1228
      %v1230 = vpop.xlane.xlu0 %1229
      %v1231 = vsel %vm1185, %v1184, 0.0
      %1232 = vadd.xlane.f32.xlu0 %v1231
      %v1233 = vpop.xlane.xlu0 %1232
      %v1234 = vadd.f32 %v1116, %v1188
      %v1235 = vadd.f32 %v1119, %v1191
      %v1236 = vadd.f32 %v1122, %v1194
      %v1237 = vadd.f32 %v1125, %v1197
      %v1238 = vadd.f32 %v1128, %v1200
      %v1239 = vadd.f32 %v1131, %v1203
      %v1240 = vadd.f32 %v1134, %v1206
      %v1241 = vadd.f32 %v1137, %v1209
      %v1242 = vadd.f32 %v1140, %v1212
      %v1243 = vadd.f32 %v1143, %v1215
      %v1244 = vadd.f32 %v1146, %v1218
      %v1245 = vadd.f32 %v1149, %v1221
      %v1246 = vadd.f32 %v1152, %v1224
      %v1247 = vadd.f32 %v1155, %v1227
      %v1248 = vadd.f32 %v1158, %v1230
      %v1249 = vadd.f32 %v1161, %v1233
      %v1250 = vld [vmem:[#allocation2] sm:$0x1]
      %v1252 = vlaneseq
      %v1253 = vshrl.u32 %v1252, 7
      %v1254 = vsub.s32 0, %v1253
      %v1255 = vrot.slane %v1250, %v1254
      %v1257 = vadd.f32 %v1234, %v1255
      %v1258 = vadd.f32 %v1235, %v1255
      %v1259 = vadd.f32 %v1236, %v1255
      %v1260 = vadd.f32 %v1237, %v1255
      %v1261 = vadd.f32 %v1238, %v1255
      %v1262 = vadd.f32 %v1239, %v1255
      %v1263 = vadd.f32 %v1240, %v1255
      %v1264 = vadd.f32 %v1241, %v1255
      %v1265 = vadd.f32 %v1242, %v1255
      %v1266 = vadd.f32 %v1243, %v1255
      %v1267 = vadd.f32 %v1244, %v1255
      %v1268 = vadd.f32 %v1245, %v1255
      %v1269 = vadd.f32 %v1246, %v1255
      %v1270 = vadd.f32 %v1247, %v1255
      %v1271 = vadd.f32 %v1248, %v1255
      %v1272 = vadd.f32 %v1249, %v1255
      %vm1273 = vcmask 7168
      %1274 = vst.msk [vmem:[%s461] sm:$0xff] %vm1273, %v1257
      %1275 = vst.msk [vmem:[%s461 + $0x8] sm:$0xff] %vm1273, %v1258
      %1276 = vst.msk [vmem:[%s461 + $0x10] sm:$0xff] %vm1273, %v1259
      %1277 = vst.msk [vmem:[%s461 + $0x18] sm:$0xff] %vm1273, %v1260
      %1278 = vst.msk [vmem:[%s461 + $0x20] sm:$0xff] %vm1273, %v1261
      %1279 = vst.msk [vmem:[%s461 + $0x28] sm:$0xff] %vm1273, %v1262
      %1280 = vst.msk [vmem:[%s461 + $0x30] sm:$0xff] %vm1273, %v1263
      %1281 = vst.msk [vmem:[%s461 + $0x38] sm:$0xff] %vm1273, %v1264
      %1282 = vst.msk [vmem:[%s461 + $0x40] sm:$0xff] %vm1273, %v1265
      %1283 = vst.msk [vmem:[%s461 + $0x48] sm:$0xff] %vm1273, %v1266
      %1284 = vst.msk [vmem:[%s461 + $0x50] sm:$0xff] %vm1273, %v1267
      %1285 = vst.msk [vmem:[%s461 + $0x58] sm:$0xff] %vm1273, %v1268
      %1286 = vst.msk [vmem:[%s461 + $0x60] sm:$0xff] %vm1273, %v1269
      %1287 = vst.msk [vmem:[%s461 + $0x68] sm:$0xff] %vm1273, %v1270
      %1288 = vst.msk [vmem:[%s461 + $0x70] sm:$0xff] %vm1273, %v1271
      %1289 = vst.msk [vmem:[%s461 + $0x78] sm:$0xff] %vm1273, %v1272
      %s1290 = smul.u32 16, %s25
      %p1291 = scmp.lt.s32.totalorder %s1290, 31
      %s1292 = scalar_select %p1291, %s1290, 31
      %s1293 = smul.addr %s1292, 8
      %s1294 = scalar_lea.vmem %s12, %s1293
      // Predicated region
      $region69: #{neumf_forward.1} parent=67 // pred_check
        %p1295 = pneg %p310
      $region70: #{neumf_forward.1} parent=67 // pred_check_branch
        %1297 = sbr.rel (%p1295) target = $region72
      $region71: #{neumf_forward.1} parent=67 // pred_region
        %s1298 = smul.u32 16, %s25
      $region72: #{neumf_forward.1} parent=67 // pred_fallthru
        _
    $region68: #{neumf_forward.1} parent=5 // pred_fallthru
      _
    %p1299 = scmp.le.s32.totalorder 2, %s20
    // Predicated region
    $region73: #{neumf_forward.1} parent=5 // pred_check
      %p1300 = pneg %p1299
    $region74: #{neumf_forward.1} parent=5 // pred_check_branch
      %1302 = sbr.rel (%p1300) target = $region76
    $region75: #{neumf_forward.1} parent=5 // pred_region
      %s1303 = ssub.s32 %s20, 2
      // Predicated region
      $region77: #{neumf_forward.1} parent=75 // pred_check
        %p1304 = pneg %p316
      $region78: #{neumf_forward.1} parent=75 // pred_check_branch
        %1306 = sbr.rel (%p1304) target = $region80
      $region79: #{neumf_forward.1} parent=75 // pred_region
        %s1307 = smul.u32 16, %s26
        %p1308 = scmp.lt.s32.totalorder %s1307, 31
        %s1309 = scalar_select %p1308, %s1307, 31
        %s1310 = smul.addr %s1309, 8
        %s1311 = scalar_lea.vmem %s12, %s1310
      $region80: #{neumf_forward.1} parent=75 // pred_fallthru
        _
    $region76: #{neumf_forward.1} parent=5 // pred_fallthru
      _
  $region6: #{neumf_forward.1} parent=0 // loop_footer
    %s24 = sadd.s32 1, %s20
  $region7: #{neumf_forward.1} parent=0 // loop_footer_branch
    %19 = sbr.rel target = $region3
  $region8: #{neumf_forward.1} parent=0 // loop_exit
    _

</llo_original>
